<compile_context>
chip_gen: v5e
topology: v5e:2x2
jax: 0.10.0
libtpu: 0.0.40
codegen_flags: <defaults>
</compile_context>

<pallas_src>
import functools

import jax
import jax.numpy as jnp
from jax.experimental import pallas as pl
from jax.experimental.pallas import tpu as pltpu

_LANE = 128


def _round_up(x, m):
    return ((x + m - 1) // m) * m


def _vmem_limit_bytes():
    """Generation-aware scoped-VMEM limit (v5e/v6e: 128 MiB phys, v7x: 64 MiB)."""
    cap = 64 * 1024 * 1024
    try:
        info = pltpu.get_tpu_info()
        cap = getattr(info, "vmem_capacity_bytes", None) or cap
    except Exception:
        pass
    return min(100 * 1024 * 1024, int(cap * 0.75))


def _choose_tiles(n_nodes, dout_pad_max, vmem_limit):
    """Pick (n_pad, tm, tk): pad N up to the row tile; keep tiles VMEM-safe."""
    n128 = _round_up(max(n_nodes, 1), _LANE)
    tm_cap = 2048 if dout_pad_max <= 256 else 1024
    if n128 > tm_cap:
        tm = tm_cap
        n_pad = _round_up(n_nodes, tm)       # pad to a multiple of the tile
    else:
        tm = n128
        # keep >= 2 lane-aligned row tiles so the "parallel" axis shards across
        # both TensorCores on v7x for mid-size graphs
        if n128 >= 4 * _LANE and (n128 // 2) % _LANE == 0:
            tm = n128 // 2
        n_pad = n128
    tk = min(1024, tm)
    while n_pad % tk != 0 or tk % _LANE != 0:
        tk -= _LANE

    # Shrink until the double-buffered streamed Stage-2 working set fits VMEM.
    def _stage2_bytes(tm_, tk_):
        return (2 * tm_ * tk_ * 2            # A tile, bf16, double-buffered
                + 2 * tk_ * dout_pad_max * 2  # XW tile, bf16, double-buffered
                + 2 * tm_ * dout_pad_max * 4  # output tile (worst-case f32)
                + tm_ * dout_pad_max * 4)     # f32 accumulator scratch

    while _stage2_bytes(tm, tk) > int(0.85 * vmem_limit):
        if tm >= tk and tm > _LANE and (tm // 2) % _LANE == 0 and n_pad % (tm // 2) == 0:
            tm //= 2
        elif tk > _LANE and (tk // 2) % _LANE == 0 and n_pad % (tk // 2) == 0:
            tk //= 2
        else:
            break
    return n_pad, tm, tk


# ---------------------------------------------------------------------------
# Stage 1: per-relation message transform  XW_r = X @ W_r  (hoisted)
# ---------------------------------------------------------------------------
def _xw_kernel(x_ref, w_ref, xw_ref):
    # bf16 MXU matmul, f32 accumulate, bf16 store (feeds the aggregation stage).
    xw_ref[...] = jnp.dot(
        x_ref[...], w_ref[...], preferred_element_type=jnp.float32
    ).astype(xw_ref.dtype)


def _xw_transform(x_bf16, w_bf16, tm, vmem_limit):
    """x: [N_pad, Din_pad] bf16, w: [R, Din_pad, Dout_pad] bf16
       -> [R, N_pad, Dout_pad] bf16."""
    n_pad, din_pad = x_bf16.shape
    num_rel, _, dout_pad = w_bf16.shape
    return pl.pallas_call(
        _xw_kernel,
        out_shape=jax.ShapeDtypeStruct((num_rel, n_pad, dout_pad), jnp.bfloat16),
        grid_spec=pltpu.PrefetchScalarGridSpec(
            num_scalar_prefetch=0,
            # relation innermost: X block index is constant over it, so the X
            # tile is DMA'd once per row tile; only the tiny W block re-fetches.
            grid=(n_pad // tm, num_rel),
            in_specs=[
                pl.BlockSpec((tm, din_pad), lambda i, r: (i, 0)),
                pl.BlockSpec((pl.Squeezed(), din_pad, dout_pad),
                             lambda i, r: (r, 0, 0)),
            ],
            out_specs=pl.BlockSpec((pl.Squeezed(), tm, dout_pad),
                                   lambda i, r: (r, i, 0)),
        ),
        compiler_params=pltpu.CompilerParams(
            dimension_semantics=("parallel", "arbitrary"),
            vmem_limit_bytes=vmem_limit,
        ),
    )(x_bf16, w_bf16)


# ---------------------------------------------------------------------------
# Stage 2: aggregation  out = sum_r A_r @ XW_r  (tiled over rows and K)
# ---------------------------------------------------------------------------
def _agg_kernel_streamed(a_ref, xw_ref, o_ref, acc_ref, *, apply_relu):
    r = pl.program_id(1)
    k = pl.program_id(2)

    @pl.when((r == 0) & (k == 0))
    def _():
        acc_ref[...] = jnp.zeros_like(acc_ref)

    acc_ref[...] += jnp.dot(a_ref[...], xw_ref[...],
                            preferred_element_type=jnp.float32)

    @pl.when((r == pl.num_programs(1) - 1) & (k == pl.num_programs(2) - 1))
    def _():
        out = acc_ref[...]
        if apply_relu:  # static per-layer flag: ReLU fused into the finalize
            out = jnp.maximum(out, 0.0)
        o_ref[...] = out.astype(o_ref.dtype)


def _agg_kernel_resident(a_ref, xw_ref, o_ref, acc_ref, *, tk, apply_relu):
    # xw_ref is the full [R, N_pad, Dout_pad] tensor, DMA'd once and resident.
    r = pl.program_id(1)
    k = pl.program_id(2)

    @pl.when((r == 0) & (k == 0))
    def _():
        acc_ref[...] = jnp.zeros_like(acc_ref)

    koff = pl.multiple_of(k * tk, _LANE)
    xw_tile = xw_ref[r, pl.ds(koff, tk), :]
    acc_ref[...] += jnp.dot(a_ref[...], xw_tile,
                            preferred_element_type=jnp.float32)

    @pl.when((r == pl.num_programs(1) - 1) & (k == pl.num_programs(2) - 1))
    def _():
        out = acc_ref[...]
        if apply_relu:
            out = jnp.maximum(out, 0.0)
        o_ref[...] = out.astype(o_ref.dtype)


def _aggregate(a_bf16, xw_bf16, tm, tk, *, apply_relu, out_dtype, vmem_limit):
    """a: [R, N_pad, N_pad] bf16, xw: [R, N_pad, Dout_pad] bf16
       -> [N_pad, Dout_pad] out_dtype (bf16 for hidden layers, f32 for last)."""
    num_rel, n_pad, _ = a_bf16.shape
    dout_pad = xw_bf16.shape[2]

    # Keep XW fully resident in VMEM when it fits the budget (DMA'd once rather
    # than re-streamed n_pad/tm times); otherwise stream (r, k)-tiles of it.
    resident_bytes = (2 * num_rel * n_pad * dout_pad * 2   # XW (assume 2 bufs)
                      + 2 * tm * tk * 2                    # A tile
                      + 2 * tm * dout_pad * 4              # output tile
                      + tm * dout_pad * 4)                 # f32 accumulator
    resident = resident_bytes <= int(0.85 * vmem_limit)

    if resident:
        kernel = functools.partial(_agg_kernel_resident, tk=tk,
                                   apply_relu=apply_relu)
        xw_spec = pl.BlockSpec((num_rel, n_pad, dout_pad),
                               lambda i, r, k: (0, 0, 0))
    else:
        kernel = functools.partial(_agg_kernel_streamed, apply_relu=apply_relu)
        xw_spec = pl.BlockSpec((pl.Squeezed(), tk, dout_pad),
                               lambda i, r, k: (r, k, 0))

    return pl.pallas_call(
        kernel,
        out_shape=jax.ShapeDtypeStruct((n_pad, dout_pad), out_dtype),
        grid_spec=pltpu.PrefetchScalarGridSpec(
            num_scalar_prefetch=0,
            grid=(n_pad // tm, num_rel, n_pad // tk),
            in_specs=[
                pl.BlockSpec((pl.Squeezed(), tm, tk), lambda i, r, k: (r, i, k)),
                xw_spec,
            ],
            out_specs=pl.BlockSpec((tm, dout_pad), lambda i, r, k: (i, 0)),
            scratch_shapes=[pltpu.VMEM((tm, dout_pad), jnp.float32)],
        ),
        compiler_params=pltpu.CompilerParams(
            # row tiles independent (megacore on v7x); relation & K are reductions
            dimension_semantics=("parallel", "arbitrary", "arbitrary"),
            vmem_limit_bytes=vmem_limit,
        ),
    )(a_bf16, xw_bf16)


# ---------------------------------------------------------------------------
# Model wrapper
# ---------------------------------------------------------------------------
class RGCNPallas:
    """Deterministically-initialized RGCN; forward built on the Pallas kernels."""

    def __init__(self, key, num_nodes, in_channels, hidden_channels,
                 out_channels, num_layers, num_edge_types, dropout=0.0):
        self.in_channels = in_channels
        self.hidden_channels = hidden_channels
        self.out_channels = out_channels
        self.num_layers = num_layers
        self.num_edge_types = num_edge_types
        self.dropout = dropout  # identity in eval mode
        self.vmem_limit = _vmem_limit_bytes()

        dims = [in_channels] + [hidden_channels] * (num_layers - 1) + [out_channels]
        self.dims = dims

        # Weights: keep f32 originals (for the reference check) and hoisted,
        # lane-padded bf16 copies consumed by the kernels.
        self.weights = []
        self.w_pads = []
        for l in range(num_layers):
            key, sub = jax.random.split(key)
            w = jax.random.normal(
                sub, (num_edge_types, dims[l], dims[l + 1]), dtype=jnp.float32
            ) * (1.0 / jnp.sqrt(jnp.float32(dims[l])))
            self.weights.append(w)
            din_pad = _round_up(dims[l], _LANE)
            dout_pad = _round_up(dims[l + 1], _LANE)
            w_pad = jnp.zeros((num_edge_types, din_pad, dout_pad), jnp.bfloat16)
            w_pad = w_pad.at[:, :dims[l], :dims[l + 1]].set(w.astype(jnp.bfloat16))
            self.w_pads.append(w_pad)

        # emb_dict analogue (featureless node types) -- unused by forward.
        key, sub = jax.random.split(key)
        self.emb = jax.random.normal(sub, (num_nodes, in_channels), dtype=jnp.float32)

        # Graph cache (filled by set_graph -- hoisted out of the per-call path).
        self.a_pad = None
        self.n_nodes = None
        self.n_pad = self.tm = self.tk = None

    def set_graph(self, A):
        """One-time pre-pass: pad + bf16-cast the adjacency and pick tiles."""
        R, N, _ = A.shape
        assert R == self.num_edge_types
        dout_pad_max = max(_round_up(d, _LANE) for d in self.dims[1:])
        n_pad, tm, tk = _choose_tiles(N, dout_pad_max, self.vmem_limit)
        a_pad = jnp.zeros((R, n_pad, n_pad), jnp.bfloat16)
        a_pad = a_pad.at[:, :N, :N].set(A.astype(jnp.bfloat16))
        self.a_pad = jax.block_until_ready(a_pad)
        self.n_nodes = N
        self.n_pad, self.tm, self.tk = n_pad, tm, tk
        return self

    def __call__(self, x, A=None):
        if self.a_pad is None:
            if A is None:
                raise ValueError("pass A once or call set_graph(A) first")
            self.set_graph(A)
        N = self.n_nodes
        n_pad, tm, tk = self.n_pad, self.tm, self.tk

        # Activations stay bf16 across stages/layers (halves HBM traffic).
        din0_pad = _round_up(self.dims[0], _LANE)
        h = jnp.zeros((n_pad, din0_pad), jnp.bfloat16)
        h = h.at[:N, :self.dims[0]].set(x.astype(jnp.bfloat16))

        for l, w_pad in enumerate(self.w_pads):
            last = (l == self.num_layers - 1)
            xw = _xw_transform(h, w_pad, tm, self.vmem_limit)   # [R,N_pad,Dout_pad] bf16
            h = _aggregate(self.a_pad, xw, tm, tk,
                           apply_relu=not last,
                           out_dtype=jnp.float32 if last else jnp.bfloat16,
                           vmem_limit=self.vmem_limit)
        return h[:N, :self.out_channels]


if __name__ == "__main__":
    key = jax.random.PRNGKey(0)

    # small deterministic problem
    N = 16       # nodes
    IN_C = 32    # in_channels
    HID_C = 64   # hidden_channels
    OUT_C = 32   # out_channels
    R = 3        # num_edge_types
    L = 2        # num_layers

    key, kx, ka = jax.random.split(key, 3)
    x = jax.random.normal(kx, (N, IN_C), dtype=jnp.float32)
    # dense per-relation, row-normalized adjacency
    a_logits = jax.random.uniform(ka, (R, N, N), dtype=jnp.float32)
    A = (a_logits > 0.7).astype(jnp.float32)
    A = A / jnp.maximum(A.sum(axis=-1, keepdims=True), 1.0)

    model = RGCNPallas(key, num_nodes=N, in_channels=IN_C,
                       hidden_channels=HID_C, out_channels=OUT_C,
                       num_layers=L, num_edge_types=R, dropout=0.5)
    model.set_graph(A)  # hoisted pad+cast: done once, not per forward
    out = jax.block_until_ready(model(x))

    # pure-JAX f32 reference (kernels use bf16 operands / f32 accumulation,
    # so the tolerance is loosened accordingly)
    h = x
    for l, w in enumerate(model.weights):
        acc = jnp.zeros((N, w.shape[2]), jnp.float32)
        for r in range(R):
            acc = acc + A[r] @ (h @ w[r])
        h = acc if l == L - 1 else jnp.maximum(acc, 0.0)

    assert out.shape == (N, OUT_C)
    assert jnp.allclose(out, h, atol=7e-2, rtol=7e-2), "mismatch vs reference"

    print("KERNEL_OK")
</pallas_src>

<mosaic_0001>
module attributes {stable_mosaic.version = 11 : i64} {
  func.func @_xw_kernel(%arg0: i32, %arg1: i32, %arg2: memref<128x128xbf16, #tpu.memory_space<vmem>>, %arg3: memref<1x128x128xbf16, #tpu.memory_space<vmem>>, %arg4: memref<1x128x128xbf16, #tpu.memory_space<vmem>>) attributes {dimension_semantics = [#tpu.dimension_semantics<parallel>, #tpu.dimension_semantics<arbitrary>], iteration_bounds = array<i64: 1, 3>, scalar_prefetch = 0 : i64, scratch_operands = 0 : i64, tpu.core_type = #tpu.core_type<tc>, window_params = [{transform_indices = @transform_0, window_bounds = array<i64: 128, 128>}, {transform_indices = @transform_1, window_bounds = array<i64: 1, 128, 128>}, {transform_indices = @transform_2, window_bounds = array<i64: 1, 128, 128>}]} {
    %c0 = arith.constant 0 : index
    %c0_0 = arith.constant 0 : index
    %0 = vector.load %arg2[%c0, %c0_0] : memref<128x128xbf16, #tpu.memory_space<vmem>>, vector<128x128xbf16>
    %c0_1 = arith.constant 0 : index
    %c0_2 = arith.constant 0 : index
    %c0_3 = arith.constant 0 : index
    %1 = vector.load %arg3[%c0_1, %c0_2, %c0_3] : memref<1x128x128xbf16, #tpu.memory_space<vmem>>, vector<1x128x128xbf16>
    %2 = vector.shape_cast %1 : vector<1x128x128xbf16> to vector<128x128xbf16>
    %cst = arith.constant dense<0.000000e+00> : vector<128x128xf32>
    %3 = tpu.matmul %0, %2, %cst {dimension_numbers = #tpu.dot_dimension_numbers<[1], [0], [0], [1], [0, 0, 1, 1], [], []>} : vector<128x128xbf16>, vector<128x128xbf16>, vector<128x128xf32> -> vector<128x128xf32>
    %4 = arith.truncf %3 : vector<128x128xf32> to vector<128x128xbf16>
    %c0_4 = arith.constant 0 : index
    %c0_5 = arith.constant 0 : index
    %c0_6 = arith.constant 0 : index
    %5 = vector.load %arg4[%c0_4, %c0_5, %c0_6] : memref<1x128x128xbf16, #tpu.memory_space<vmem>>, vector<1x128x128xbf16>
    %6 = vector.shape_cast %5 : vector<1x128x128xbf16> to vector<128x128xbf16>
    %7 = vector.shape_cast %4 : vector<128x128xbf16> to vector<1x128x128xbf16>
    tpu.vector_store %arg4[%c0_4, %c0_5, %c0_6], %7 {strides = array<i32>} : memref<1x128x128xbf16, #tpu.memory_space<vmem>>, vector<1x128x128xbf16>,
    return
  }
  func.func @transform_0(%arg0: i32, %arg1: i32) -> (i32, i32) {
    %c0_i32 = arith.constant 0 : i32
    %c0_i32_0 = arith.constant 0 : i32
    return %arg0, %c0_i32 : i32, i32
  }
  func.func @transform_1(%arg0: i32, %arg1: i32) -> (i32, i32, i32) {
    %c0_i32 = arith.constant 0 : i32
    %c0_i32_0 = arith.constant 0 : i32
    %c0_i32_1 = arith.constant 0 : i32
    return %arg1, %c0_i32, %c0_i32_0 : i32, i32, i32
  }
  func.func @transform_2(%arg0: i32, %arg1: i32) -> (i32, i32, i32) {
    %c0_i32 = arith.constant 0 : i32
    %c0_i32_0 = arith.constant 0 : i32
    return %arg1, %arg0, %c0_i32 : i32, i32, i32
  }
}

</mosaic_0001>

<llo_original>
// kernel: tpu_custom_call.1
$region0: #{tpu_custom_call.1}
  #allocation0 [shape = 'u32[]', space=smem, size = 0x4, offset = 0x4, fixed_abs, tag = 'smem constant byte address 0x4 - core index']
  #allocation1 [shape = 'u32[72,128]{1,0:T(1,128)}', space=vmem, size = 0x9000, scoped, tag = 'internal scratch']
  %s0 = inlined_call_operand.hbm [shape: bf16[128,128], index: 0, kind: input, shape index: {}]
  %s1 = inlined_call_operand.hbm [shape: bf16[3,128,128], index: 1, kind: input, shape index: {}]
  %s2 = inlined_call_operand.hbm [shape: bf16[3,128,128], index: 2, kind: output, shape index: {}]
  %s3 = sld [smem:[#allocation0]]
  $region49: #{tpu_custom_call.1} parent=0
    _
  %s5 = ssub.s32 1, %s3
  %s6 = scalar_select 0, %s5, %s3
  $region1: #{tpu_custom_call.1} parent=0
    #allocation2 [shape = 'u8[32768]{0}', space=vmem, size = 0x8000, scoped, tag = 'input window, operand 0, single buffered']
    #allocation3 [shape = 's32[2]{0}', space=sflag, size = 0x8, scoped, tag = 'scoped memory for tpu_custom_call.1']
    #allocation4 [shape = 's32[2]{0}', space=sflag, size = 0x8, scoped, tag = 'scoped memory for tpu_custom_call.1']
    #allocation5 [shape = 'u8[65536]{0}', space=vmem, size = 0x10000, scoped, tag = 'input window, operand 1']
    #allocation6 [shape = 's32[2]{0}', space=sflag, size = 0x8, scoped, tag = 'scoped memory for tpu_custom_call.1']
    #allocation7 [shape = 'u8[65536]{0}', space=vmem, size = 0x10000, scoped, tag = 'output window, operand 0']
    %7 = vsyncpa [#allocation3], 0
    %8 = vsyncpa [#allocation6], 0
    %s9 = scalar_lea.sflag [#allocation6], 1
    %10 = vsyncpa %s9, 0
    %11 = vsyncpa [#allocation4], 0
    %s12 = scalar_lea.sflag [#allocation4], 1
    %13 = vsyncpa %s12, 0
    loop: start=0, step=1, limit=5
    $region2: #{tpu_custom_call.1} parent=1 // loop_pre_header
      _
    $region3: #{tpu_custom_call.1} parent=1 // loop_header
      %s15 = sphi 0, %s19
      %p16 = scmp.ge.s32.totalorder %s15, 5
      %s22 = sphi 0, %s34
      %s23 = sphi 0, %s30
      %s24 = sphi 0, %s22
      %s25 = sphi 0, %s23
      %s26 = sphi 0, %s24
      %s27 = sphi 0, %s25
      %s37 = sphi 0, %s39
      %s40 = sphi 0, %s37
      %s41 = sphi 0, %s40
      %s57 = sphi 0, %s41
      %s63 = sphi 0, %s65
      %s66 = sphi 0, %s63
      %s67 = sphi 0, %s66
      %s83 = sphi 0, %s67
      %s91 = sphi 0, %s93
      %s94 = sphi 0, %s91
      %s95 = sphi 0, %s94
      %s111 = sphi 0, %s95
    $region4: #{tpu_custom_call.1} parent=1 // loop_header_branch
      %18 = sbr.rel (%p16) target = $region8
    $region5: #{tpu_custom_call.1} parent=1 // loop_body
      %s20 = ssub.s32 %s15, 1
      %s21 = ssub.s32 %s15, 2
      %s28 = sadd.s32 1, %s23
      %p29 = scmp.ge.s32.totalorder %s28, 3
      %s30 = scalar_select %p29, 0, %s28
      %s31 = sadd.s32 1, %s22
      %s32 = scalar_select %p29, %s31, %s22
      %p33 = scmp.ge.s32.totalorder %s32, 1
      %s34 = scalar_select %p33, 0, %s32
      %s35 = ssub.s32 %s22, %s34
      %p36 = scmp.eq.s32.totalorder %s35, 0
      %s38 = sadd.s32 %s37, 1
      %s39 = scalar_select %p36, %s37, %s38
      %p42 = pneg %p36
      %p43 = scmp.eq.s32.totalorder %s15, 2
      %p44 = por %p42, %p43
      %p45 = scmp.ne.s32.totalorder %s37, %s40
      %p46 = scmp.eq.s32.totalorder %s15, 0
      %p47 = por %p45, %p46
      %p48 = scmp.ne.s32.totalorder %s37, %s40
      %p49 = scmp.eq.s32.totalorder %s20, 2
      %p50 = por %p48, %p49
      %p51 = scmp.ne.s32.totalorder %s40, %s41
      %p52 = scmp.eq.s32.totalorder %s20, 0
      %p53 = por %p51, %p52
      %p54 = scmp.ne.s32.totalorder %s40, %s41
      %p55 = scmp.eq.s32.totalorder %s21, 2
      %p56 = por %p54, %p55
      %p58 = scmp.ne.s32.totalorder %s41, %s57
      %p59 = scmp.eq.s32.totalorder %s21, 0
      %p60 = por %p58, %p59
      %s61 = ssub.s32 %s23, %s30
      %p62 = scmp.eq.s32.totalorder %s61, 0
      %s64 = sadd.s32 %s63, 1
      %s65 = scalar_select %p62, %s63, %s64
      %p68 = pneg %p62
      %p69 = scmp.eq.s32.totalorder %s15, 2
      %p70 = por %p68, %p69
      %p71 = scmp.ne.s32.totalorder %s63, %s66
      %p72 = scmp.eq.s32.totalorder %s15, 0
      %p73 = por %p71, %p72
      %p74 = scmp.ne.s32.totalorder %s63, %s66
      %p75 = scmp.eq.s32.totalorder %s20, 2
      %p76 = por %p74, %p75
      %p77 = scmp.ne.s32.totalorder %s66, %s67
      %p78 = scmp.eq.s32.totalorder %s20, 0
      %p79 = por %p77, %p78
      %p80 = scmp.ne.s32.totalorder %s66, %s67
      %p81 = scmp.eq.s32.totalorder %s21, 2
      %p82 = por %p80, %p81
      %p84 = scmp.ne.s32.totalorder %s67, %s83
      %p85 = scmp.eq.s32.totalorder %s21, 0
      %p86 = por %p84, %p85
      %s87 = ssub.s32 %s23, %s30
      %s88 = ssub.s32 %s22, %s34
      %s89 = sor.u32 %s87, %s88
      %p90 = scmp.eq.s32.totalorder %s89, 0
      %s92 = sadd.s32 %s91, 1
      %s93 = scalar_select %p90, %s91, %s92
      %p96 = pneg %p90
      %p97 = scmp.eq.s32.totalorder %s15, 2
      %p98 = por %p96, %p97
      %p99 = scmp.ne.s32.totalorder %s91, %s94
      %p100 = scmp.eq.s32.totalorder %s15, 0
      %p101 = por %p99, %p100
      %p102 = scmp.ne.s32.totalorder %s91, %s94
      %p103 = scmp.eq.s32.totalorder %s20, 2
      %p104 = por %p102, %p103
      %p105 = scmp.ne.s32.totalorder %s94, %s95
      %p106 = scmp.eq.s32.totalorder %s20, 0
      %p107 = por %p105, %p106
      %p108 = scmp.ne.s32.totalorder %s94, %s95
      %p109 = scmp.eq.s32.totalorder %s21, 2
      %p110 = por %p108, %p109
      %p112 = scmp.ne.s32.totalorder %s95, %s111
      %p113 = scmp.eq.s32.totalorder %s21, 0
      %p114 = por %p112, %p113
      %p115 = scmp.le.s32.totalorder 1, %s15
      %p116 = scmp.lt.s32.totalorder %s15, 4
      %p117 = pnand %p115, %p116
      %p118 = pneg %p117
      // Predicated region
      $region9: #{tpu_custom_call.1} parent=5 // pred_check
        _
      $region10: #{tpu_custom_call.1} parent=5 // pred_check_branch
        %120 = sbr.rel (%p117) target = $region12
      $region11: #{tpu_custom_call.1} parent=5 // pred_region
        %s121 = ssub.s32 %s15, 1
        // Predicated region
        $region13: #{tpu_custom_call.1} parent=11 // pred_check
          %p122 = pneg %p53
        $region14: #{tpu_custom_call.1} parent=11 // pred_check_branch
          %124 = sbr.rel (%p122) target = $region16
        $region15: #{tpu_custom_call.1} parent=11 // pred_region
          %s125 = smul.u32 16, %s24
          %127 = vsyncadd [#allocation3], 0
          %s128 = smul.addr %s125, 4
          %s129 = scalar_lea.hbm %s0, %s128
          %s130 = sshll.u32 %s129, 4
          %s131 = int_to_ptr.hbm [resolvable:$true] %s130
          %s132 = sshll.u32 [#allocation2], 4
          %s133 = int_to_ptr.vmem [resolvable:$true] %s132
          %138 = dma.hbm_to_vmem [thread:$0]  %s131, 1024, %s133, [#allocation3], 64, 64, 4
        $region16: #{tpu_custom_call.1} parent=11 // pred_fallthru
          _
      $region12: #{tpu_custom_call.1} parent=5 // pred_fallthru
        _
      %p139 = scmp.lt.s32.totalorder %s15, 3
      // Predicated region
      $region17: #{tpu_custom_call.1} parent=5 // pred_check
        %p140 = pneg %p139
      $region18: #{tpu_custom_call.1} parent=5 // pred_check_branch
        %142 = sbr.rel (%p140) target = $region20
      $region19: #{tpu_custom_call.1} parent=5 // pred_region
        // Predicated region
        $region21: #{tpu_custom_call.1} parent=19 // pred_check
          %p143 = pneg %p73
        $region22: #{tpu_custom_call.1} parent=19 // pred_check_branch
          %145 = sbr.rel (%p143) target = $region24
        $region23: #{tpu_custom_call.1} parent=19 // pred_region
          %s146 = sand.u32 %s63, 1
          %s147 = scalar_lea.sflag [#allocation6], %s146
          %s148 = sand.u32 %s63, 1
          %s149 = smul.addr %s148, 64
          %s150 = scalar_lea.vmem [#allocation5], %s149
          %152 = vsyncadd %s147, 0
          %s153 = smul.addr %s23, 16
          %s154 = smul.addr %s153, 4
          %s155 = scalar_lea.hbm %s1, %s154
          %s156 = sshll.u32 %s155, 4
          %s157 = int_to_ptr.hbm [resolvable:$true] %s156
          %s158 = sshll.u32 %s150, 4
          %s159 = int_to_ptr.vmem [resolvable:$true] %s158
          %164 = dma.hbm_to_vmem [thread:$0]  %s157, 1024, %s159, %s147, 64, 64, 4
        $region24: #{tpu_custom_call.1} parent=19 // pred_fallthru
          _
      $region20: #{tpu_custom_call.1} parent=5 // pred_fallthru
        _
      %p165 = scmp.le.s32.totalorder 1, %s15
      %p166 = scmp.lt.s32.totalorder %s15, 4
      %p167 = pnand %p165, %p166
      %p168 = pneg %p167
      // Predicated region
      $region25: #{tpu_custom_call.1} parent=5 // pred_check
        _
      $region26: #{tpu_custom_call.1} parent=5 // pred_check_branch
        %170 = sbr.rel (%p167) target = $region28
      $region27: #{tpu_custom_call.1} parent=5 // pred_region
        %s171 = ssub.s32 %s15, 1
        // Predicated region
        $region29: #{tpu_custom_call.1} parent=27 // pred_check
          %p172 = pneg %p53
        $region30: #{tpu_custom_call.1} parent=27 // pred_check_branch
          %174 = sbr.rel (%p172) target = $region32
        $region31: #{tpu_custom_call.1} parent=27 // pred_region
          %176 = dma.done [#allocation3], 1024
        $region32: #{tpu_custom_call.1} parent=27 // pred_fallthru
          _
        %s177 = sand.u32 %s66, 1
        %s178 = scalar_lea.sflag [#allocation6], %s177
        %s179 = sand.u32 %s66, 1
        %s180 = smul.addr %s179, 64
        %s181 = scalar_lea.vmem [#allocation5], %s180
        // Predicated region
        $region33: #{tpu_custom_call.1} parent=27 // pred_check
          %p182 = pneg %p79
        $region34: #{tpu_custom_call.1} parent=27 // pred_check_branch
          %184 = sbr.rel (%p182) target = $region36
        $region35: #{tpu_custom_call.1} parent=27 // pred_region
          %186 = dma.done %s178, 1024
        $region36: #{tpu_custom_call.1} parent=27 // pred_fallthru
          _
        %p187 = pneg %p53
        %p188 = pneg %p50
        %s189 = sand.u32 %s66, 1
        %s190 = scalar_lea.sflag [#allocation6], %s189
        %s191 = sand.u32 %s66, 1
        %s192 = smul.addr %s191, 64
        %s193 = scalar_lea.vmem [#allocation5], %s192
        %p194 = pneg %p79
        %p195 = pneg %p76
        %p196 = pneg %p107
        %p197 = pneg %p104
        %s198 = sand.u32 %s94, 1
        %s199 = scalar_lea.sflag [#allocation4], %s198
        %s200 = sand.u32 %s94, 1
        %s201 = smul.addr %s200, 64
        %s202 = scalar_lea.vmem [#allocation7], %s201
        %s203 = smul.u32 16, %s24
        %s204 = smul.u32 16, %s24
        %v205 = vld [vmem:[#allocation2] sm:$0xf]
        %v206 = vld [vmem:[#allocation2 + $0x4] sm:$0xf]
        %v207 = vld [vmem:[#allocation2 + $0x8] sm:$0xf]
        %v208 = vld [vmem:[#allocation2 + $0xc] sm:$0xf]
        %v209 = vld [vmem:[#allocation2 + $0x10] sm:$0xf]
        %v210 = vld [vmem:[#allocation2 + $0x14] sm:$0xf]
        %v211 = vld [vmem:[#allocation2 + $0x18] sm:$0xf]
        %v212 = vld [vmem:[#allocation2 + $0x1c] sm:$0xf]
        %v213 = vld [vmem:[#allocation2 + $0x20] sm:$0xf]
        %v214 = vld [vmem:[#allocation2 + $0x24] sm:$0xf]
        %v215 = vld [vmem:[#allocation2 + $0x28] sm:$0xf]
        %v216 = vld [vmem:[#allocation2 + $0x2c] sm:$0xf]
        %v217 = vld [vmem:[#allocation2 + $0x30] sm:$0xf]
        %v218 = vld [vmem:[#allocation2 + $0x34] sm:$0xf]
        %v219 = vld [vmem:[#allocation2 + $0x38] sm:$0xf]
        %v220 = vld [vmem:[#allocation2 + $0x3c] sm:$0xf]
        %v221 = vld [vmem:[%s181] sm:$0xf]
        %v222 = vld [vmem:[%s181 + $0x4] sm:$0xf]
        %v223 = vld [vmem:[%s181 + $0x8] sm:$0xf]
        %v224 = vld [vmem:[%s181 + $0xc] sm:$0xf]
        %v225 = vld [vmem:[%s181 + $0x10] sm:$0xf]
        %v226 = vld [vmem:[%s181 + $0x14] sm:$0xf]
        %v227 = vld [vmem:[%s181 + $0x18] sm:$0xf]
        %v228 = vld [vmem:[%s181 + $0x1c] sm:$0xf]
        %v229 = vld [vmem:[%s181 + $0x20] sm:$0xf]
        %v230 = vld [vmem:[%s181 + $0x24] sm:$0xf]
        %v231 = vld [vmem:[%s181 + $0x28] sm:$0xf]
        %v232 = vld [vmem:[%s181 + $0x2c] sm:$0xf]
        %v233 = vld [vmem:[%s181 + $0x30] sm:$0xf]
        %v234 = vld [vmem:[%s181 + $0x34] sm:$0xf]
        %v235 = vld [vmem:[%s181 + $0x38] sm:$0xf]
        %v236 = vld [vmem:[%s181 + $0x3c] sm:$0xf]
        %v253 = vunpack.c.l.b16 %v205
        %v254 = vunpack.c.l.b16 %v206
        %v255 = vunpack.c.l.b16 %v207
        %v256 = vunpack.c.l.b16 %v208
        %v257 = vunpack.c.l.b16 %v209
        %v258 = vunpack.c.l.b16 %v210
        %v259 = vunpack.c.l.b16 %v211
        %v260 = vunpack.c.l.b16 %v212
        %v261 = vunpack.c.l.b16 %v213
        %v262 = vunpack.c.l.b16 %v214
        %v263 = vunpack.c.l.b16 %v215
        %v264 = vunpack.c.l.b16 %v216
        %v265 = vunpack.c.l.b16 %v217
        %v266 = vunpack.c.l.b16 %v218
        %v267 = vunpack.c.l.b16 %v219
        %v268 = vunpack.c.l.b16 %v220
        %v269 = vpack.c.b16 %v254, %v253
        %v270 = vpack.c.b16 %v256, %v255
        %v271 = vpack.c.b16 %v258, %v257
        %v272 = vpack.c.b16 %v260, %v259
        %v273 = vpack.c.b16 %v262, %v261
        %v274 = vpack.c.b16 %v264, %v263
        %v275 = vpack.c.b16 %v266, %v265
        %v276 = vpack.c.b16 %v268, %v267
        %v301 = vunpack.c.l.b16 %v221
        %v302 = vunpack.c.l.b16 %v222
        %v303 = vunpack.c.l.b16 %v223
        %v304 = vunpack.c.l.b16 %v224
        %v305 = vunpack.c.l.b16 %v225
        %v306 = vunpack.c.l.b16 %v226
        %v307 = vunpack.c.l.b16 %v227
        %v308 = vunpack.c.l.b16 %v228
        %v309 = vunpack.c.l.b16 %v229
        %v310 = vunpack.c.l.b16 %v230
        %v311 = vunpack.c.l.b16 %v231
        %v312 = vunpack.c.l.b16 %v232
        %v313 = vunpack.c.l.b16 %v233
        %v314 = vunpack.c.l.b16 %v234
        %v315 = vunpack.c.l.b16 %v235
        %v316 = vunpack.c.l.b16 %v236
        %v317 = vpack.c.b16 %v302, %v301
        %v318 = vpack.c.b16 %v304, %v303
        %v319 = vpack.c.b16 %v306, %v305
        %v320 = vpack.c.b16 %v308, %v307
        %v321 = vpack.c.b16 %v310, %v309
        %v322 = vpack.c.b16 %v312, %v311
        %v323 = vpack.c.b16 %v314, %v313
        %v324 = vpack.c.b16 %v316, %v315
        %333 = vmatpush.bf16.msra.mxu0 %v324
        %334 = vmatpush.bf16.msra.mxu0 %v323
        %335 = vmatpush.bf16.msra.mxu0 %v322
        %336 = vmatpush.bf16.msra.mxu0 %v321
        %337 = vmatpush.bf16.msra.mxu0 %v320
        %338 = vmatpush.bf16.msra.mxu0 %v319
        %339 = vmatpush.bf16.msra.mxu0 %v318
        %340 = vmatpush.bf16.msra.mxu0 %v317
        %341 = vmatmul.bf16.gmra.mxu0 %v269
        %v342 = vpop.f32.mrf.mxu0
        %v343 = vadd.f32 0.0, %v342
        %v344 = vpop.f32.mrf.mxu0
        %v345 = vadd.f32 0.0, %v344
        %346 = vmatmul.bf16.gmra.mxu0 %v270
        %v347 = vpop.f32.mrf.mxu0
        %v348 = vadd.f32 0.0, %v347
        %v349 = vpop.f32.mrf.mxu0
        %v350 = vadd.f32 0.0, %v349
        %351 = vmatmul.bf16.gmra.mxu0 %v271
        %v352 = vpop.f32.mrf.mxu0
        %v353 = vadd.f32 0.0, %v352
        %v354 = vpop.f32.mrf.mxu0
        %v355 = vadd.f32 0.0, %v354
        %356 = vmatmul.bf16.gmra.mxu0 %v272
        %v357 = vpop.f32.mrf.mxu0
        %v358 = vadd.f32 0.0, %v357
        %v359 = vpop.f32.mrf.mxu0
        %v360 = vadd.f32 0.0, %v359
        %361 = vmatmul.bf16.gmra.mxu0 %v273
        %v362 = vpop.f32.mrf.mxu0
        %v363 = vadd.f32 0.0, %v362
        %v364 = vpop.f32.mrf.mxu0
        %v365 = vadd.f32 0.0, %v364
        %366 = vmatmul.bf16.gmra.mxu0 %v274
        %v367 = vpop.f32.mrf.mxu0
        %v368 = vadd.f32 0.0, %v367
        %v369 = vpop.f32.mrf.mxu0
        %v370 = vadd.f32 0.0, %v369
        %371 = vmatmul.bf16.gmra.mxu0 %v275
        %v372 = vpop.f32.mrf.mxu0
        %v373 = vadd.f32 0.0, %v372
        %v374 = vpop.f32.mrf.mxu0
        %v375 = vadd.f32 0.0, %v374
        %376 = vmatmul.bf16.gmra.mxu0 %v276
        %v377 = vpop.f32.mrf.mxu0
        %v378 = vadd.f32 0.0, %v377
        %v379 = vpop.f32.mrf.mxu0
        %v380 = vadd.f32 0.0, %v379
        %381 = vdwg.mxu0
        %v382 = vpack.c.bf16 %v343, %v343
        %v383 = vpack.c.bf16 %v345, %v345
        %v384 = vpack.c.bf16 %v348, %v348
        %v385 = vpack.c.bf16 %v350, %v350
        %v386 = vpack.c.bf16 %v353, %v353
        %v387 = vpack.c.bf16 %v355, %v355
        %v388 = vpack.c.bf16 %v358, %v358
        %v389 = vpack.c.bf16 %v360, %v360
        %v390 = vpack.c.bf16 %v363, %v363
        %v391 = vpack.c.bf16 %v365, %v365
        %v392 = vpack.c.bf16 %v368, %v368
        %v393 = vpack.c.bf16 %v370, %v370
        %v394 = vpack.c.bf16 %v373, %v373
        %v395 = vpack.c.bf16 %v375, %v375
        %v396 = vpack.c.bf16 %v378, %v378
        %v397 = vpack.c.bf16 %v380, %v380
        %398 = vst [vmem:[%s202] sm:$0xf] %v382
        %399 = vst [vmem:[%s202 + $0x4] sm:$0xf] %v383
        %400 = vst [vmem:[%s202 + $0x8] sm:$0xf] %v384
        %401 = vst [vmem:[%s202 + $0xc] sm:$0xf] %v385
        %402 = vst [vmem:[%s202 + $0x10] sm:$0xf] %v386
        %403 = vst [vmem:[%s202 + $0x14] sm:$0xf] %v387
        %404 = vst [vmem:[%s202 + $0x18] sm:$0xf] %v388
        %405 = vst [vmem:[%s202 + $0x1c] sm:$0xf] %v389
        %406 = vst [vmem:[%s202 + $0x20] sm:$0xf] %v390
        %407 = vst [vmem:[%s202 + $0x24] sm:$0xf] %v391
        %408 = vst [vmem:[%s202 + $0x28] sm:$0xf] %v392
        %409 = vst [vmem:[%s202 + $0x2c] sm:$0xf] %v393
        %410 = vst [vmem:[%s202 + $0x30] sm:$0xf] %v394
        %411 = vst [vmem:[%s202 + $0x34] sm:$0xf] %v395
        %412 = vst [vmem:[%s202 + $0x38] sm:$0xf] %v396
        %413 = vst [vmem:[%s202 + $0x3c] sm:$0xf] %v397
        %s414 = sand.u32 %s94, 1
        %s415 = scalar_lea.sflag [#allocation4], %s414
        %s416 = sand.u32 %s94, 1
        %s417 = smul.addr %s416, 64
        %s418 = scalar_lea.vmem [#allocation7], %s417
        // Predicated region
        $region37: #{tpu_custom_call.1} parent=27 // pred_check
          %p419 = pneg %p104
        $region38: #{tpu_custom_call.1} parent=27 // pred_check_branch
          %421 = sbr.rel (%p419) target = $region40
        $region39: #{tpu_custom_call.1} parent=27 // pred_region
          %s422 = smul.u32 16, %s24
          %424 = vsyncadd %s415, 0
          %s425 = smul.addr %s25, 16
          %s426 = sadd.s32 %s422, %s425
          %s427 = smul.addr %s426, 4
          %s428 = scalar_lea.hbm %s2, %s427
          %s429 = sshll.u32 %s418, 4
          %s430 = int_to_ptr.vmem [resolvable:$true] %s429
          %s431 = sshll.u32 %s428, 4
          %s432 = int_to_ptr.hbm [resolvable:$true] %s431
          %437 = dma.vmem_to_hbm [thread:$0]  %s430, 1024, %s432, %s415, 64, 64, 4
        $region40: #{tpu_custom_call.1} parent=27 // pred_fallthru
          _
      $region28: #{tpu_custom_call.1} parent=5 // pred_fallthru
        _
      %p438 = scmp.le.s32.totalorder 2, %s15
      // Predicated region
      $region41: #{tpu_custom_call.1} parent=5 // pred_check
        %p439 = pneg %p438
      $region42: #{tpu_custom_call.1} parent=5 // pred_check_branch
        %441 = sbr.rel (%p439) target = $region44
      $region43: #{tpu_custom_call.1} parent=5 // pred_region
        %s442 = ssub.s32 %s15, 2
        // Predicated region
        $region45: #{tpu_custom_call.1} parent=43 // pred_check
          %p443 = pneg %p110
        $region46: #{tpu_custom_call.1} parent=43 // pred_check_branch
          %445 = sbr.rel (%p443) target = $region48
        $region47: #{tpu_custom_call.1} parent=43 // pred_region
          %s446 = sand.u32 %s95, 1
          %s447 = scalar_lea.sflag [#allocation4], %s446
          %s448 = sand.u32 %s95, 1
          %s449 = smul.addr %s448, 64
          %s450 = scalar_lea.vmem [#allocation7], %s449
          %452 = dma.done %s447, 1024
        $region48: #{tpu_custom_call.1} parent=43 // pred_fallthru
          _
      $region44: #{tpu_custom_call.1} parent=5 // pred_fallthru
        _
    $region6: #{tpu_custom_call.1} parent=1 // loop_footer
      %s19 = sadd.s32 1, %s15
    $region7: #{tpu_custom_call.1} parent=1 // loop_footer_branch
      %14 = sbr.rel target = $region3
    $region8: #{tpu_custom_call.1} parent=1 // loop_exit
      _
    %453 = vsyncpa [#allocation3], 1
    %s454 = scalar_lea.sflag [#allocation3], 1
    %455 = vsyncpa %s454, 1
    %456 = vsyncpa [#allocation6], 1
    %s457 = scalar_lea.sflag [#allocation6], 1
    %458 = vsyncpa %s457, 1
    %459 = vsyncpa [#allocation4], 1
    %s460 = scalar_lea.sflag [#allocation4], 1
    %461 = vsyncpa %s460, 1

</llo_original>
